<compile_context>
chip_gen: v6e
topology: v6e:2x2x1
jax: 0.10.0
libtpu: 0.0.40
codegen_flags: <defaults>
</compile_context>

<pallas_src>
import functools

import jax
import jax.numpy as jnp
from jax.experimental import pallas as pl
from jax.experimental.pallas import tpu as pltpu


def _ln_kernel_plain(z_ref, a_ref, b_ref, o_ref, *, eps, inv_d, inv_dm1):
    """Unpacked path (k == 1): reduction over the full lane axis (width == D)."""
    z = z_ref[...].astype(jnp.float32)                      # (tb, D)
    s1 = jnp.sum(z, axis=1, keepdims=True)                  # (tb, 1)
    s2 = jnp.sum(z * z, axis=1, keepdims=True)              # (tb, 1)  (independent of s1)
    mu = s1 * inv_d
    var = jnp.maximum((s2 - s1 * mu) * inv_dm1, 0.0)        # unbiased /(D-1)
    inv = pl.reciprocal(jnp.sqrt(var) + eps, approx=False)  # exact: torch-level numerics
    out = (z - mu) * inv * a_ref[...] + b_ref[...]
    o_ref[...] = out.astype(o_ref.dtype)


def _ln_kernel_packed(z_ref, a_ref, b_ref, m_ref, mt_ref, o_ref, *, eps, inv_d, inv_dm1):
    """Lane-dense path (k > 1): k logical rows packed per 128-lane group.

    m_ref  : (k*D, k) block-diagonal ones -> segmented sums on the MXU.
    mt_ref : (k, k*D) its transpose       -> segmented broadcast back to lanes.
    """
    z = z_ref[...].astype(jnp.float32)                      # (tb, k*D)
    m = m_ref[...]
    mt = mt_ref[...]
    s1 = jnp.dot(z, m, preferred_element_type=jnp.float32)       # (tb, k) segment sums
    s2 = jnp.dot(z * z, m, preferred_element_type=jnp.float32)   # (tb, k) segment sumsq
    mu = s1 * inv_d
    var = jnp.maximum((s2 - s1 * mu) * inv_dm1, 0.0)
    inv = pl.reciprocal(jnp.sqrt(var) + eps, approx=False)       # (tb, k)
    mu_b = jnp.dot(mu, mt, preferred_element_type=jnp.float32)   # (tb, k*D) broadcast
    inv_b = jnp.dot(inv, mt, preferred_element_type=jnp.float32)
    out = (z - mu_b) * inv_b * a_ref[...] + b_ref[...]
    o_ref[...] = out.astype(o_ref.dtype)


def _round_up(x, m):
    return ((x + m - 1) // m) * m


def _pick_tb(rows, width, itemsize):
    """Pick the batch tile (in packed rows).  HBM-streaming bound -> big tiles."""
    sub = 16 if itemsize <= 2 else 8               # bf16 sublane packing / f32 sublane
    # ~1M elements per tile (~4 MiB of f32 working rows).
    target_elems = 1 << 20
    tb = max(sub, (target_elems // max(1, width)) // sub * sub)
    # Large-D guard: 2x(in) + 2x(out) double-buffered tiles + ~6 f32 intermediates
    # must stay under ~36 MiB so we fit v7x's 64 MiB physical VMEM with headroom.
    per_row_bytes = width * (4 * itemsize + 6 * 4)
    tb_cap = max(8, int((36 * 1024 * 1024) // max(1, per_row_bytes)) // 8 * 8)
    tb = min(tb, tb_cap)
    if tb >= rows:
        if rows > 2 * sub:
            # v7x megacore: keep >= 2 grid steps so the "parallel" batch axis is
            # actually sharded across both TensorCores (neutral on v5e/v6e).
            return _round_up(pl.cdiv(rows, 2), sub)
        return rows                                 # full extent: always a legal block dim
    return tb


def layer_norm(z, a_2, b_2, eps=0.001, tb=None):
    """Pallas TPU LayerNorm over dim=1 of a 2-D input z of shape (B, D)."""
    B, D = z.shape
    if D == 1:
        # Mirrors `if z.size(1) == 1: return z`
        return z

    out_dtype = z.dtype
    itemsize = jnp.dtype(z.dtype).itemsize

    # Lane-dense packing factor: k rows per 128-lane group when D is a small divisor of 128.
    k = 128 // D if (D < 128 and 128 % D == 0) else 1
    W = k * D

    # Params: pre-cast to f32 and pre-tile to (1, W) so the kernel never casts them.
    a2 = jnp.tile(a_2.astype(jnp.float32).reshape(1, D), (1, k))
    b2 = jnp.tile(b_2.astype(jnp.float32).reshape(1, D), (1, k))

    if k > 1:
        Bp = _round_up(B, k)
        zp = jnp.pad(z, ((0, Bp - B), (0, 0))) if Bp != B else z
        zp = zp.reshape(Bp // k, W)                 # row-major: k consecutive rows per packed row
        rows = Bp // k
    else:
        Bp = B
        zp = z
        rows = B

    if tb is None:
        tb = _pick_tb(rows, W, itemsize)
    tb = min(tb, rows)

    grid = (pl.cdiv(rows, tb),)
    z_spec = pl.BlockSpec((tb, W), lambda i: (i, 0))         # tiled over (packed) batch
    par_spec = pl.BlockSpec((1, W), lambda i: (0, 0))        # resident params
    out_spec = pl.BlockSpec((tb, W), lambda i: (i, 0))

    # Explicit VMEM budget: 2x double-buffered in + out tiles, ~6 f32 intermediate
    # copies of the tile, plus headroom.  Capped below v7x's 64 MiB physical VMEM.
    vmem_need = 4 * tb * W * itemsize + 6 * tb * W * 4 + (2 << 20)
    vmem_limit = int(min(60 << 20, max(16 << 20, vmem_need)))

    cparams = pltpu.CompilerParams(
        dimension_semantics=("parallel",),       # rows independent -> shard across TCs
        vmem_limit_bytes=vmem_limit,
    )
    kw = dict(eps=float(eps), inv_d=1.0 / D, inv_dm1=1.0 / (D - 1))

    if k > 1:
        # Block-diagonal ones matrix for segmented MXU reductions/broadcasts.
        seg = jnp.arange(W, dtype=jnp.int32) // D
        M = (seg[:, None] == jnp.arange(k, dtype=jnp.int32)[None, :]).astype(jnp.float32)  # (W, k)
        Mt = M.T                                                                           # (k, W)
        out = pl.pallas_call(
            functools.partial(_ln_kernel_packed, **kw),
            out_shape=jax.ShapeDtypeStruct((rows, W), out_dtype),
            grid_spec=pl.GridSpec(
                grid=grid,
                in_specs=[
                    z_spec,
                    par_spec,
                    par_spec,
                    pl.BlockSpec((W, k), lambda i: (0, 0)),
                    pl.BlockSpec((k, W), lambda i: (0, 0)),
                ],
                out_specs=out_spec,
            ),
            compiler_params=cparams,
        )(zp, a2, b2, M, Mt)
        return out.reshape(Bp, D)[:B]
    else:
        return pl.pallas_call(
            functools.partial(_ln_kernel_plain, **kw),
            out_shape=jax.ShapeDtypeStruct((rows, W), out_dtype),
            grid_spec=pl.GridSpec(
                grid=grid,
                in_specs=[z_spec, par_spec, par_spec],
                out_specs=out_spec,
            ),
            compiler_params=cparams,
        )(zp, a2, b2)


def _reference(z, a_2, b_2, eps):
    mu = jnp.mean(z, axis=1, keepdims=True)
    D = z.shape[1]
    sigma = jnp.sqrt(jnp.sum((z - mu) ** 2, axis=1, keepdims=True) / (D - 1))
    return (z - mu) / (sigma + eps) * a_2[None, :] + b_2[None, :]


if __name__ == "__main__":
    key = jax.random.PRNGKey(0)
    k1, k2, k3, k4, k5 = jax.random.split(key, 5)

    # Case 1: module-default shapes (B=8, d_hid=32) -> lane-dense packed path (k=4).
    B, d_hid = 8, 32
    z = jax.random.normal(k1, (B, d_hid), dtype=jnp.float32)
    a_2 = jnp.ones((d_hid,), dtype=jnp.float32)   # per module __init__
    b_2 = jnp.zeros((d_hid,), dtype=jnp.float32)
    out = jax.block_until_ready(layer_norm(z, a_2, b_2, eps=0.001))
    ref = _reference(z, a_2, b_2, 0.001)
    assert jnp.allclose(out, ref, atol=1e-5, rtol=1e-5), "case 1 mismatch"

    # Case 2: packed path with multiple grid steps and a partial last tile.
    B2 = 52
    z2 = jax.random.normal(k2, (B2, d_hid), dtype=jnp.float32)
    out2 = jax.block_until_ready(layer_norm(z2, a_2, b_2, eps=0.001, tb=8))
    ref2 = _reference(z2, a_2, b_2, 0.001)
    assert jnp.allclose(out2, ref2, atol=1e-5, rtol=1e-5), "case 2 mismatch"

    # Case 3: D that does not pack (k=1 path), non-trivial affine params,
    #         >=2 grid steps with a partial last tile.
    B3, d3 = 24, 48
    z3 = jax.random.normal(k3, (B3, d3), dtype=jnp.float32)
    a3 = 1.0 + 0.1 * jax.random.normal(k4, (d3,), dtype=jnp.float32)
    b3 = 0.1 * jax.random.normal(k5, (d3,), dtype=jnp.float32)
    out3 = jax.block_until_ready(layer_norm(z3, a3, b3, eps=0.001))
    ref3 = _reference(z3, a3, b3, 0.001)
    assert jnp.allclose(out3, ref3, atol=1e-5, rtol=1e-5), "case 3 mismatch"

    print("KERNEL_OK")
</pallas_src>

<mosaic_0001>
module attributes {stable_mosaic.version = 11 : i64} {
  func.func @_ln_kernel_packed(%arg0: i32, %arg1: memref<2x128xf32, #tpu.memory_space<vmem>>, %arg2: memref<1x128xf32, #tpu.memory_space<vmem>>, %arg3: memref<1x128xf32, #tpu.memory_space<vmem>>, %arg4: memref<128x4xf32, #tpu.memory_space<vmem>>, %arg5: memref<4x128xf32, #tpu.memory_space<vmem>>, %arg6: memref<2x128xf32, #tpu.memory_space<vmem>>) attributes {dimension_semantics = [#tpu.dimension_semantics<parallel>], iteration_bounds = array<i64: 1>, scalar_prefetch = 0 : i64, scratch_operands = 0 : i64, tpu.core_type = #tpu.core_type<tc>, window_params = [{transform_indices = @transform_0, window_bounds = array<i64: 2, 128>}, {pipeline_mode = #tpu.pipeline_mode<synchronous>, transform_indices = @transform_1, window_bounds = array<i64: 1, 128>}, {pipeline_mode = #tpu.pipeline_mode<synchronous>, transform_indices = @transform_2, window_bounds = array<i64: 1, 128>}, {pipeline_mode = #tpu.pipeline_mode<synchronous>, transform_indices = @transform_3, window_bounds = array<i64: 128, 4>}, {pipeline_mode = #tpu.pipeline_mode<synchronous>, transform_indices = @transform_4, window_bounds = array<i64: 4, 128>}, {transform_indices = @transform_5, window_bounds = array<i64: 2, 128>}]} {
    %c0 = arith.constant 0 : index
    %c0_0 = arith.constant 0 : index
    %0 = vector.load %arg1[%c0, %c0_0] : memref<2x128xf32, #tpu.memory_space<vmem>>, vector<2x128xf32>
    %c0_1 = arith.constant 0 : index
    %c0_2 = arith.constant 0 : index
    %1 = vector.load %arg4[%c0_1, %c0_2] : memref<128x4xf32, #tpu.memory_space<vmem>>, vector<128x4xf32>
    %c0_3 = arith.constant 0 : index
    %c0_4 = arith.constant 0 : index
    %2 = vector.load %arg5[%c0_3, %c0_4] : memref<4x128xf32, #tpu.memory_space<vmem>>, vector<4x128xf32>
    %cst = arith.constant dense<0.000000e+00> : vector<2x4xf32>
    %3 = tpu.matmul %0, %1, %cst {dimension_numbers = #tpu.dot_dimension_numbers<[1], [0], [0], [1], [0, 0, 1, 1], [], []>} : vector<2x128xf32>, vector<128x4xf32>, vector<2x4xf32> -> vector<2x4xf32>
    %4 = arith.mulf %0, %0 : vector<2x128xf32>
    %cst_5 = arith.constant dense<0.000000e+00> : vector<2x4xf32>
    %5 = tpu.matmul %4, %1, %cst_5 {dimension_numbers = #tpu.dot_dimension_numbers<[1], [0], [0], [1], [0, 0, 1, 1], [], []>} : vector<2x128xf32>, vector<128x4xf32>, vector<2x4xf32> -> vector<2x4xf32>
    %cst_6 = arith.constant 3.125000e-02 : f32
    %6 = vector.broadcast %cst_6 : f32 to vector<2x4xf32>
    %7 = arith.mulf %3, %6 : vector<2x4xf32>
    %8 = arith.mulf %3, %7 : vector<2x4xf32>
    %9 = arith.subf %5, %8 : vector<2x4xf32>
    %cst_7 = arith.constant 0.0322580636 : f32
    %10 = vector.broadcast %cst_7 : f32 to vector<2x4xf32>
    %11 = arith.mulf %9, %10 : vector<2x4xf32>
    %cst_8 = arith.constant 0.000000e+00 : f32
    %12 = vector.broadcast %cst_8 : f32 to vector<2x4xf32>
    %13 = arith.maximumf %11, %12 : vector<2x4xf32>
    %14 = math.sqrt %13 : vector<2x4xf32>
    %cst_9 = arith.constant 1.000000e-03 : f32
    %15 = vector.broadcast %cst_9 : f32 to vector<2x4xf32>
    %16 = arith.addf %14, %15 : vector<2x4xf32>
    %17 = tpu.reciprocal %16 : vector<2x4xf32> -> vector<2x4xf32>
    %cst_10 = arith.constant dense<0.000000e+00> : vector<2x128xf32>
    %18 = tpu.matmul %7, %2, %cst_10 {dimension_numbers = #tpu.dot_dimension_numbers<[1], [0], [0], [1], [0, 0, 1, 1], [], []>} : vector<2x4xf32>, vector<4x128xf32>, vector<2x128xf32> -> vector<2x128xf32>
    %cst_11 = arith.constant dense<0.000000e+00> : vector<2x128xf32>
    %19 = tpu.matmul %17, %2, %cst_11 {dimension_numbers = #tpu.dot_dimension_numbers<[1], [0], [0], [1], [0, 0, 1, 1], [], []>} : vector<2x4xf32>, vector<4x128xf32>, vector<2x128xf32> -> vector<2x128xf32>
    %20 = arith.subf %0, %18 : vector<2x128xf32>
    %21 = arith.mulf %20, %19 : vector<2x128xf32>
    %c0_12 = arith.constant 0 : index
    %c0_13 = arith.constant 0 : index
    %22 = vector.load %arg2[%c0_12, %c0_13] : memref<1x128xf32, #tpu.memory_space<vmem>>, vector<1x128xf32>
    %23 = vector.broadcast %22 : vector<1x128xf32> to vector<2x128xf32>
    %24 = arith.mulf %21, %23 : vector<2x128xf32>
    %c0_14 = arith.constant 0 : index
    %c0_15 = arith.constant 0 : index
    %25 = vector.load %arg3[%c0_14, %c0_15] : memref<1x128xf32, #tpu.memory_space<vmem>>, vector<1x128xf32>
    %26 = vector.broadcast %25 : vector<1x128xf32> to vector<2x128xf32>
    %27 = arith.addf %24, %26 : vector<2x128xf32>
    %c0_16 = arith.constant 0 : index
    %c0_17 = arith.constant 0 : index
    %28 = vector.load %arg6[%c0_16, %c0_17] : memref<2x128xf32, #tpu.memory_space<vmem>>, vector<2x128xf32>
    tpu.vector_store %arg6[%c0_16, %c0_17], %27 {strides = array<i32>} : memref<2x128xf32, #tpu.memory_space<vmem>>, vector<2x128xf32>,
    return
  }
  func.func @transform_0(%arg0: i32) -> (i32, i32) {
    %c0_i32 = arith.constant 0 : i32
    %c0_i32_0 = arith.constant 0 : i32
    return %arg0, %c0_i32 : i32, i32
  }
  func.func @transform_1(%arg0: i32) -> (i32, i32) {
    %c0_i32 = arith.constant 0 : i32
    %c0_i32_0 = arith.constant 0 : i32
    %c0_i32_1 = arith.constant 0 : i32
    return %c0_i32, %c0_i32_0 : i32, i32
  }
  func.func @transform_2(%arg0: i32) -> (i32, i32) {
    %c0_i32 = arith.constant 0 : i32
    %c0_i32_0 = arith.constant 0 : i32
    %c0_i32_1 = arith.constant 0 : i32
    return %c0_i32, %c0_i32_0 : i32, i32
  }
  func.func @transform_3(%arg0: i32) -> (i32, i32) {
    %c0_i32 = arith.constant 0 : i32
    %c0_i32_0 = arith.constant 0 : i32
    %c0_i32_1 = arith.constant 0 : i32
    return %c0_i32, %c0_i32_0 : i32, i32
  }
  func.func @transform_4(%arg0: i32) -> (i32, i32) {
    %c0_i32 = arith.constant 0 : i32
    %c0_i32_0 = arith.constant 0 : i32
    %c0_i32_1 = arith.constant 0 : i32
    return %c0_i32, %c0_i32_0 : i32, i32
  }
  func.func @transform_5(%arg0: i32) -> (i32, i32) {
    %c0_i32 = arith.constant 0 : i32
    %c0_i32_0 = arith.constant 0 : i32
    return %arg0, %c0_i32 : i32, i32
  }
}

</mosaic_0001>

<llo_original>
// kernel: tpu_custom_call.1
$region0: #{tpu_custom_call.1}
  #allocation0 [shape = 'u32[]', space=smem, size = 0x4, offset = 0x4, fixed_abs, tag = 'smem constant byte address 0x4 - core index']
  #allocation1 [shape = 'u32[144,128]{1,0:T(1,128)}', space=vmem, size = 0x12000, scoped, tag = 'internal scratch']
  %s0 = inlined_call_operand.vmem [shape: f32[2,128], index: 0, kind: input, shape index: {}]
  %s1 = inlined_call_operand.vmem [shape: f32[1,128], index: 1, kind: input, shape index: {}]
  %s2 = inlined_call_operand.vmem [shape: f32[1,128], index: 2, kind: input, shape index: {}]
  %s3 = inlined_call_operand.vmem [shape: f32[128,4], index: 3, kind: input, shape index: {}]
  %s4 = inlined_call_operand.vmem [shape: f32[4,128], index: 4, kind: input, shape index: {}]
  %s5 = inlined_call_operand.hbm [shape: f32[2,128], index: 5, kind: output, shape index: {}]
  %s6 = sld [smem:[#allocation0]]
  $region30: #{tpu_custom_call.1} parent=0
    _
  %s8 = ssub.s32 1, %s6
  %s9 = scalar_select 0, %s8, %s6
  $region1: #{tpu_custom_call.1} parent=0
    #allocation2 [shape = 'u8[1024]{0}', space=vmem, size = 0x400, scoped, tag = 'output window, operand 0, single buffered']
    #allocation3 [shape = 's32[1]{0}', space=sflag, size = 0x4, scoped, tag = 'scoped memory for tpu_custom_call.1']
    %10 = vsyncpa [#allocation3], 0
    // Predicated region
    $region2: #{tpu_custom_call.1} parent=1 // pred_check
      _
    $region3: #{tpu_custom_call.1} parent=1 // pred_check_branch
      %12 = sbr.rel (0) target = $region5
    $region4: #{tpu_custom_call.1} parent=1 // pred_region
      _
    $region5: #{tpu_custom_call.1} parent=1 // pred_fallthru
      _
    // Predicated region
    $region6: #{tpu_custom_call.1} parent=1 // pred_check
      _
    $region7: #{tpu_custom_call.1} parent=1 // pred_check_branch
      %14 = sbr.rel (0) target = $region9
    $region8: #{tpu_custom_call.1} parent=1 // pred_region
      _
    $region9: #{tpu_custom_call.1} parent=1 // pred_fallthru
      _
    // Predicated region
    $region10: #{tpu_custom_call.1} parent=1 // pred_check
      _
    $region11: #{tpu_custom_call.1} parent=1 // pred_check_branch
      %16 = sbr.rel (0) target = $region13
    $region12: #{tpu_custom_call.1} parent=1 // pred_region
      _
    $region13: #{tpu_custom_call.1} parent=1 // pred_fallthru
      _
    // Predicated region
    $region14: #{tpu_custom_call.1} parent=1 // pred_check
      _
    $region15: #{tpu_custom_call.1} parent=1 // pred_check_branch
      %18 = sbr.rel (0) target = $region17
    $region16: #{tpu_custom_call.1} parent=1 // pred_region
      _
    $region17: #{tpu_custom_call.1} parent=1 // pred_fallthru
      _
    // Predicated region
    $region18: #{tpu_custom_call.1} parent=1 // pred_check
      _
    $region19: #{tpu_custom_call.1} parent=1 // pred_check_branch
      %20 = sbr.rel (0) target = $region21
    $region20: #{tpu_custom_call.1} parent=1 // pred_region
      _
    $region21: #{tpu_custom_call.1} parent=1 // pred_fallthru
      _
    %v21 = vld [vmem:[%s0] sm:$0x3]
    %v22 = vld [vmem:[%s3] sm:$0xff]
    %v23 = vld [vmem:[%s3 + $0x8] sm:$0xff]
    %v24 = vld [vmem:[%s3 + $0x10] sm:$0xff]
    %v25 = vld [vmem:[%s3 + $0x18] sm:$0xff]
    %v26 = vld [vmem:[%s3 + $0x20] sm:$0xff]
    %v27 = vld [vmem:[%s3 + $0x28] sm:$0xff]
    %v28 = vld [vmem:[%s3 + $0x30] sm:$0xff]
    %v29 = vld [vmem:[%s3 + $0x38] sm:$0xff]
    %v30 = vld [vmem:[%s3 + $0x40] sm:$0xff]
    %v31 = vld [vmem:[%s3 + $0x48] sm:$0xff]
    %v32 = vld [vmem:[%s3 + $0x50] sm:$0xff]
    %v33 = vld [vmem:[%s3 + $0x58] sm:$0xff]
    %v34 = vld [vmem:[%s3 + $0x60] sm:$0xff]
    %v35 = vld [vmem:[%s3 + $0x68] sm:$0xff]
    %v36 = vld [vmem:[%s3 + $0x70] sm:$0xff]
    %v37 = vld [vmem:[%s3 + $0x78] sm:$0xff]
    %v38 = vld [vmem:[%s4] sm:$0xf]
    %39 = vmatprep.subr.mxu0 0.0
    %40 = vmatpush1.msra.mxu0 %v37
    %41 = vmatprep.subr.mxu0 0.0
    %42 = vmatpush1.msra.mxu0 %v36
    %43 = vmatprep.subr.mxu0 0.0
    %44 = vmatpush1.msra.mxu0 %v35
    %45 = vmatprep.subr.mxu0 0.0
    %46 = vmatpush1.msra.mxu0 %v34
    %47 = vmatprep.subr.mxu0 0.0
    %48 = vmatpush1.msra.mxu0 %v33
    %49 = vmatprep.subr.mxu0 0.0
    %50 = vmatpush1.msra.mxu0 %v32
    %51 = vmatprep.subr.mxu0 0.0
    %52 = vmatpush1.msra.mxu0 %v31
    %53 = vmatprep.subr.mxu0 0.0
    %54 = vmatpush1.msra.mxu0 %v30
    %55 = vmatprep.subr.mxu0 0.0
    %56 = vmatpush1.msra.mxu0 %v29
    %57 = vmatprep.subr.mxu0 0.0
    %58 = vmatpush1.msra.mxu0 %v28
    %59 = vmatprep.subr.mxu0 0.0
    %60 = vmatpush1.msra.mxu0 %v27
    %61 = vmatprep.subr.mxu0 0.0
    %62 = vmatpush1.msra.mxu0 %v26
    %63 = vmatprep.subr.mxu0 0.0
    %64 = vmatpush1.msra.mxu0 %v25
    %65 = vmatprep.subr.mxu0 0.0
    %66 = vmatpush1.msra.mxu0 %v24
    %67 = vmatprep.subr.mxu0 0.0
    %68 = vmatpush1.msra.mxu0 %v23
    %69 = vmatprep.subr.mxu0 0.0
    %70 = vmatpush1.msra.mxu0 %v22
    %71 = vmatprep.subr.mxu0 0.0
    %72 = vmatpush2.msra.mxu0 0.0
    %73 = vmatprep.subr.mxu0 0.0
    %74 = vmatpush2.msra.mxu0 0.0
    %75 = vmatprep.subr.mxu0 0.0
    %76 = vmatpush2.msra.mxu0 0.0
    %77 = vmatprep.subr.mxu0 0.0
    %78 = vmatpush2.msra.mxu0 0.0
    %79 = vmatprep.subr.mxu0 0.0
    %80 = vmatpush2.msra.mxu0 0.0
    %81 = vmatprep.subr.mxu0 0.0
    %82 = vmatpush2.msra.mxu0 0.0
    %83 = vmatprep.subr.mxu0 0.0
    %84 = vmatpush2.msra.mxu0 0.0
    %85 = vmatprep.subr.mxu0 0.0
    %86 = vmatpush2.msra.mxu0 0.0
    %87 = vmatprep.subr.mxu0 0.0
    %88 = vmatpush2.msra.mxu0 0.0
    %89 = vmatprep.subr.mxu0 0.0
    %90 = vmatpush2.msra.mxu0 0.0
    %91 = vmatprep.subr.mxu0 0.0
    %92 = vmatpush2.msra.mxu0 0.0
    %93 = vmatprep.subr.mxu0 0.0
    %94 = vmatpush2.msra.mxu0 0.0
    %95 = vmatprep.subr.mxu0 0.0
    %96 = vmatpush2.msra.mxu0 0.0
    %97 = vmatprep.subr.mxu0 0.0
    %98 = vmatpush2.msra.mxu0 0.0
    %99 = vmatprep.subr.mxu0 0.0
    %100 = vmatpush2.msra.mxu0 0.0
    %101 = vmatprep.subr.mxu0 0.0
    %102 = vmatpush2.msra.mxu0 0.0
    %103 = vmatprep.mubr.f32.mxu0 0.0
    %104 = vmatmul.mubr.f32.gmra.mxu0 %v21
    %v105 = vpop.f32.mrf.mxu0
    %v106 = vadd.f32 0.0, %v105
    %v107 = vpop.f32.mrf.mxu0
    %108 = vdwg.mxu0
    %v109 = vmul.f32 %v21, %v21
    %110 = vmatprep.subr.mxu0 0.0
    %111 = vmatpush1.msra.mxu0 %v37
    %112 = vmatprep.subr.mxu0 0.0
    %113 = vmatpush1.msra.mxu0 %v36
    %114 = vmatprep.subr.mxu0 0.0
    %115 = vmatpush1.msra.mxu0 %v35
    %116 = vmatprep.subr.mxu0 0.0
    %117 = vmatpush1.msra.mxu0 %v34
    %118 = vmatprep.subr.mxu0 0.0
    %119 = vmatpush1.msra.mxu0 %v33
    %120 = vmatprep.subr.mxu0 0.0
    %121 = vmatpush1.msra.mxu0 %v32
    %122 = vmatprep.subr.mxu0 0.0
    %123 = vmatpush1.msra.mxu0 %v31
    %124 = vmatprep.subr.mxu0 0.0
    %125 = vmatpush1.msra.mxu0 %v30
    %126 = vmatprep.subr.mxu0 0.0
    %127 = vmatpush1.msra.mxu0 %v29
    %128 = vmatprep.subr.mxu0 0.0
    %129 = vmatpush1.msra.mxu0 %v28
    %130 = vmatprep.subr.mxu0 0.0
    %131 = vmatpush1.msra.mxu0 %v27
    %132 = vmatprep.subr.mxu0 0.0
    %133 = vmatpush1.msra.mxu0 %v26
    %134 = vmatprep.subr.mxu0 0.0
    %135 = vmatpush1.msra.mxu0 %v25
    %136 = vmatprep.subr.mxu0 0.0
    %137 = vmatpush1.msra.mxu0 %v24
    %138 = vmatprep.subr.mxu0 0.0
    %139 = vmatpush1.msra.mxu0 %v23
    %140 = vmatprep.subr.mxu0 0.0
    %141 = vmatpush1.msra.mxu0 %v22
    %142 = vmatprep.subr.mxu0 0.0
    %143 = vmatpush2.msra.mxu0 0.0
    %144 = vmatprep.subr.mxu0 0.0
    %145 = vmatpush2.msra.mxu0 0.0
    %146 = vmatprep.subr.mxu0 0.0
    %147 = vmatpush2.msra.mxu0 0.0
    %148 = vmatprep.subr.mxu0 0.0
    %149 = vmatpush2.msra.mxu0 0.0
    %150 = vmatprep.subr.mxu0 0.0
    %151 = vmatpush2.msra.mxu0 0.0
    %152 = vmatprep.subr.mxu0 0.0
    %153 = vmatpush2.msra.mxu0 0.0
    %154 = vmatprep.subr.mxu0 0.0
    %155 = vmatpush2.msra.mxu0 0.0
    %156 = vmatprep.subr.mxu0 0.0
    %157 = vmatpush2.msra.mxu0 0.0
    %158 = vmatprep.subr.mxu0 0.0
    %159 = vmatpush2.msra.mxu0 0.0
    %160 = vmatprep.subr.mxu0 0.0
    %161 = vmatpush2.msra.mxu0 0.0
    %162 = vmatprep.subr.mxu0 0.0
    %163 = vmatpush2.msra.mxu0 0.0
    %164 = vmatprep.subr.mxu0 0.0
    %165 = vmatpush2.msra.mxu0 0.0
    %166 = vmatprep.subr.mxu0 0.0
    %167 = vmatpush2.msra.mxu0 0.0
    %168 = vmatprep.subr.mxu0 0.0
    %169 = vmatpush2.msra.mxu0 0.0
    %170 = vmatprep.subr.mxu0 0.0
    %171 = vmatpush2.msra.mxu0 0.0
    %172 = vmatprep.subr.mxu0 0.0
    %173 = vmatpush2.msra.mxu0 0.0
    %174 = vmatprep.mubr.f32.mxu0 0.0
    %175 = vmatmul.mubr.f32.gmra.mxu0 %v109
    %v176 = vpop.f32.mrf.mxu0
    %v177 = vadd.f32 0.0, %v176
    %v178 = vpop.f32.mrf.mxu0
    %179 = vdwg.mxu0
    %v180 = vmul.f32 %v106, 0.03125
    %v181 = vmul.f32 %v106, %v180
    %v182 = vsub.f32 %v177, %v181
    %v183 = vmul.f32 %v182, 0.032258064
    %v184 = vmax.f32 %v183, 0.0
    %v185 = vrsqrt.pop %v184
    %v186 = vmul.f32 %v184, %v185
    %vm187 = vcmp.eq.f32.partialorder %v184, inf
    %v188 = vsel %vm187, %v184, %v186
    %vm189 = vcmp.eq.f32.partialorder %v184, 0.0
    %v190 = vand.u32 %v184, 2147483648
    %v191 = vsel %vm189, %v190, %v188
    %v192 = vadd.f32 %v191, 0.001
    %v193 = vrcp.pop %v192
    %vm194 = vcmask 31744
    %v196 = vsel %vm194, %v180, 0
    %vm198 = vcmask 1043456
    %v200 = vsel %vm198, %v38, 0
    %202 = vmatprep.subr.mxu0 0.0
    %203 = vmatpush1.msra.mxu0 0.0
    %204 = vmatprep.subr.mxu0 0.0
    %205 = vmatpush1.msra.mxu0 0.0
    %206 = vmatprep.subr.mxu0 0.0
    %207 = vmatpush1.msra.mxu0 0.0
    %208 = vmatprep.subr.mxu0 0.0
    %209 = vmatpush1.msra.mxu0 0.0
    %210 = vmatprep.subr.mxu0 0.0
    %211 = vmatpush1.msra.mxu0 0.0
    %212 = vmatprep.subr.mxu0 0.0
    %213 = vmatpush1.msra.mxu0 0.0
    %214 = vmatprep.subr.mxu0 0.0
    %215 = vmatpush1.msra.mxu0 0.0
    %216 = vmatprep.subr.mxu0 0.0
    %217 = vmatpush1.msra.mxu0 0.0
    %218 = vmatprep.subr.mxu0 0.0
    %219 = vmatpush1.msra.mxu0 0.0
    %220 = vmatprep.subr.mxu0 0.0
    %221 = vmatpush1.msra.mxu0 0.0
    %222 = vmatprep.subr.mxu0 0.0
    %223 = vmatpush1.msra.mxu0 0.0
    %224 = vmatprep.subr.mxu0 0.0
    %225 = vmatpush1.msra.mxu0 0.0
    %226 = vmatprep.subr.mxu0 0.0
    %227 = vmatpush1.msra.mxu0 0.0
    %228 = vmatprep.subr.mxu0 0.0
    %229 = vmatpush1.msra.mxu0 0.0
    %230 = vmatprep.subr.mxu0 0.0
    %231 = vmatpush1.msra.mxu0 0.0
    %232 = vmatprep.subr.mxu0 0.0
    %233 = vmatpush1.msra.mxu0 %v200
    %234 = vmatprep.subr.mxu0 0.0
    %235 = vmatpush2.msra.mxu0 0.0
    %236 = vmatprep.subr.mxu0 0.0
    %237 = vmatpush2.msra.mxu0 0.0
    %238 = vmatprep.subr.mxu0 0.0
    %239 = vmatpush2.msra.mxu0 0.0
    %240 = vmatprep.subr.mxu0 0.0
    %241 = vmatpush2.msra.mxu0 0.0
    %242 = vmatprep.subr.mxu0 0.0
    %243 = vmatpush2.msra.mxu0 0.0
    %244 = vmatprep.subr.mxu0 0.0
    %245 = vmatpush2.msra.mxu0 0.0
    %246 = vmatprep.subr.mxu0 0.0
    %247 = vmatpush2.msra.mxu0 0.0
    %248 = vmatprep.subr.mxu0 0.0
    %249 = vmatpush2.msra.mxu0 0.0
    %250 = vmatprep.subr.mxu0 0.0
    %251 = vmatpush2.msra.mxu0 0.0
    %252 = vmatprep.subr.mxu0 0.0
    %253 = vmatpush2.msra.mxu0 0.0
    %254 = vmatprep.subr.mxu0 0.0
    %255 = vmatpush2.msra.mxu0 0.0
    %256 = vmatprep.subr.mxu0 0.0
    %257 = vmatpush2.msra.mxu0 0.0
    %258 = vmatprep.subr.mxu0 0.0
    %259 = vmatpush2.msra.mxu0 0.0
    %260 = vmatprep.subr.mxu0 0.0
    %261 = vmatpush2.msra.mxu0 0.0
    %262 = vmatprep.subr.mxu0 0.0
    %263 = vmatpush2.msra.mxu0 0.0
    %264 = vmatprep.subr.mxu0 0.0
    %265 = vmatpush2.msra.mxu0 0.0
    %266 = vmatprep.mubr.f32.mxu0 0.0
    %267 = vmatmul.mubr.f32.gmra.mxu0 %v196
    %v268 = vpop.f32.mrf.mxu0
    %v269 = vadd.f32 0.0, %v268
    %v270 = vpop.f32.mrf.mxu0
    %271 = vdwg.mxu0
    %v273 = vsel %vm194, %v193, 0
    %275 = vmatprep.subr.mxu0 0.0
    %276 = vmatpush1.msra.mxu0 0.0
    %277 = vmatprep.subr.mxu0 0.0
    %278 = vmatpush1.msra.mxu0 0.0
    %279 = vmatprep.subr.mxu0 0.0
    %280 = vmatpush1.msra.mxu0 0.0
    %281 = vmatprep.subr.mxu0 0.0
    %282 = vmatpush1.msra.mxu0 0.0
    %283 = vmatprep.subr.mxu0 0.0
    %284 = vmatpush1.msra.mxu0 0.0
    %285 = vmatprep.subr.mxu0 0.0
    %286 = vmatpush1.msra.mxu0 0.0
    %287 = vmatprep.subr.mxu0 0.0
    %288 = vmatpush1.msra.mxu0 0.0
    %289 = vmatprep.subr.mxu0 0.0
    %290 = vmatpush1.msra.mxu0 0.0
    %291 = vmatprep.subr.mxu0 0.0
    %292 = vmatpush1.msra.mxu0 0.0
    %293 = vmatprep.subr.mxu0 0.0
    %294 = vmatpush1.msra.mxu0 0.0
    %295 = vmatprep.subr.mxu0 0.0
    %296 = vmatpush1.msra.mxu0 0.0
    %297 = vmatprep.subr.mxu0 0.0
    %298 = vmatpush1.msra.mxu0 0.0
    %299 = vmatprep.subr.mxu0 0.0
    %300 = vmatpush1.msra.mxu0 0.0
    %301 = vmatprep.subr.mxu0 0.0
    %302 = vmatpush1.msra.mxu0 0.0
    %303 = vmatprep.subr.mxu0 0.0
    %304 = vmatpush1.msra.mxu0 0.0
    %305 = vmatprep.subr.mxu0 0.0
    %306 = vmatpush1.msra.mxu0 %v200
    %307 = vmatprep.subr.mxu0 0.0
    %308 = vmatpush2.msra.mxu0 0.0
    %309 = vmatprep.subr.mxu0 0.0
    %310 = vmatpush2.msra.mxu0 0.0
    %311 = vmatprep.subr.mxu0 0.0
    %312 = vmatpush2.msra.mxu0 0.0
    %313 = vmatprep.subr.mxu0 0.0
    %314 = vmatpush2.msra.mxu0 0.0
    %315 = vmatprep.subr.mxu0 0.0
    %316 = vmatpush2.msra.mxu0 0.0
    %317 = vmatprep.subr.mxu0 0.0
    %318 = vmatpush2.msra.mxu0 0.0
    %319 = vmatprep.subr.mxu0 0.0
    %320 = vmatpush2.msra.mxu0 0.0
    %321 = vmatprep.subr.mxu0 0.0
    %322 = vmatpush2.msra.mxu0 0.0
    %323 = vmatprep.subr.mxu0 0.0
    %324 = vmatpush2.msra.mxu0 0.0
    %325 = vmatprep.subr.mxu0 0.0
    %326 = vmatpush2.msra.mxu0 0.0
    %327 = vmatprep.subr.mxu0 0.0
    %328 = vmatpush2.msra.mxu0 0.0
    %329 = vmatprep.subr.mxu0 0.0
    %330 = vmatpush2.msra.mxu0 0.0
    %331 = vmatprep.subr.mxu0 0.0
    %332 = vmatpush2.msra.mxu0 0.0
    %333 = vmatprep.subr.mxu0 0.0
    %334 = vmatpush2.msra.mxu0 0.0
    %335 = vmatprep.subr.mxu0 0.0
    %336 = vmatpush2.msra.mxu0 0.0
    %337 = vmatprep.subr.mxu0 0.0
    %338 = vmatpush2.msra.mxu0 0.0
    %339 = vmatprep.mubr.f32.mxu0 0.0
    %340 = vmatmul.mubr.f32.gmra.mxu0 %v273
    %v341 = vpop.f32.mrf.mxu0
    %v342 = vadd.f32 0.0, %v341
    %v343 = vpop.f32.mrf.mxu0
    %344 = vdwg.mxu0
    %v345 = vsub.f32 %v21, %v269
    %v346 = vmul.f32 %v345, %v342
    %v347 = vld [vmem:[%s1] sm:$0x1]
    %v349 = vlaneseq
    %v350 = vshrl.u32 %v349, 7
    %v351 = vsub.s32 0, %v350
    %v352 = vrot.slane %v347, %v351
    %v354 = vmul.f32 %v346, %v352
    %v355 = vld [vmem:[%s2] sm:$0x1]
    %v357 = vlaneseq
    %v358 = vshrl.u32 %v357, 7
    %v359 = vsub.s32 0, %v358
    %v360 = vrot.slane %v355, %v359
    %v362 = vadd.f32 %v354, %v360
    %363 = vst [vmem:[#allocation2] sm:$0x3] %v362
    // Predicated region
    $region22: #{tpu_custom_call.1} parent=1 // pred_check
      _
    $region23: #{tpu_custom_call.1} parent=1 // pred_check_branch
      %365 = sbr.rel (0) target = $region25
    $region24: #{tpu_custom_call.1} parent=1 // pred_region
      %s367 = ssub.s32 32, 32
      %368 = vsyncadd [#allocation3], %s367
      %s370 = sshll.u32 [#allocation2], 4
      %s371 = int_to_ptr.vmem [resolvable:$true] %s370
      %373 = dma.vmem_to_hbm [thread:$0]  %s371, 32, %s5, [#allocation3]
    $region25: #{tpu_custom_call.1} parent=1 // pred_fallthru
      _
    // Predicated region
    $region26: #{tpu_custom_call.1} parent=1 // pred_check
      _
    $region27: #{tpu_custom_call.1} parent=1 // pred_check_branch
      %375 = sbr.rel (0) target = $region29
    $region28: #{tpu_custom_call.1} parent=1 // pred_region
      %376 = dma.done [#allocation3], 32
    $region29: #{tpu_custom_call.1} parent=1 // pred_fallthru
      _
    %377 = vsyncpa [#allocation3], 1

</llo_original>
